<compile_context>
chip_gen: v6e
topology: v6e:2x2x1
jax: 0.10.0
libtpu: 0.0.40
codegen_flags: <defaults>
</compile_context>

<pallas_src>
import jax
import jax.numpy as jnp
from jax.experimental import pallas as pl
from jax.experimental.pallas import tpu as pltpu

LN_EPS = 1e-5  # nn.LayerNorm default


def _round_up(x, m):
    return (x + m - 1) // m * m


def _itemsize(dt):
    return jnp.dtype(dt).itemsize


def _physical_vmem_bytes():
    """Per-TensorCore VMEM capacity; conservative 64 MiB (v7x) fallback."""
    try:
        info = pltpu.get_tpu_info()
        cap = getattr(info, "vmem_capacity_bytes", None)
        if cap:
            return int(cap)
    except Exception:
        pass
    return 64 * 1024 * 1024


def _layernorm_f32(x32, w, b):
    mean = jnp.mean(x32, axis=-1, keepdims=True)
    xc = x32 - mean
    var = jnp.mean(xc * xc, axis=-1, keepdims=True)
    return xc * jax.lax.rsqrt(var + LN_EPS) * w + b


# ---------------------------------------------------------------------------
# Kernel bodies
# ---------------------------------------------------------------------------
# Resident-weight path: 1-D grid over row tiles; whole (D, Dp) weight stays in
# VMEM (constant index_map -> fetched once).  LN output feeds the MXU directly
# from registers/VMEM without an HBM round trip.
def _kernel_resident_res(h_ref, r_ref, lnw_ref, lnb_ref, w_ref, b_ref,
                         out_ref, res_ref):
    res32 = h_ref[...].astype(jnp.float32) + r_ref[...].astype(jnp.float32)
    res_ref[...] = res32.astype(res_ref.dtype)
    normed = _layernorm_f32(res32, lnw_ref[...], lnb_ref[...])
    acc = jnp.dot(normed.astype(w_ref.dtype), w_ref[...],
                  preferred_element_type=jnp.float32)
    out_ref[...] = (acc + b_ref[...]).astype(out_ref.dtype)


def _kernel_resident_nores(h_ref, lnw_ref, lnb_ref, w_ref, b_ref, out_ref):
    res32 = h_ref[...].astype(jnp.float32)
    normed = _layernorm_f32(res32, lnw_ref[...], lnb_ref[...])
    acc = jnp.dot(normed.astype(w_ref.dtype), w_ref[...],
                  preferred_element_type=jnp.float32)
    out_ref[...] = (acc + b_ref[...]).astype(out_ref.dtype)


# Streaming-weight path: 2-D grid (row tiles, output-N tiles).  Add + LN runs
# once per row tile (j == 0) into a VMEM scratch which feeds the MXU for every
# (D, tn) weight tile.  j must stay the innermost, non-core-sharded axis.
def _kernel_stream_res(h_ref, r_ref, lnw_ref, lnb_ref, w_ref, b_ref,
                       out_ref, res_ref, normed_scr):
    @pl.when(pl.program_id(1) == 0)
    def _():
        res32 = h_ref[...].astype(jnp.float32) + r_ref[...].astype(jnp.float32)
        res_ref[...] = res32.astype(res_ref.dtype)
        normed_scr[...] = _layernorm_f32(
            res32, lnw_ref[...], lnb_ref[...]).astype(normed_scr.dtype)

    acc = jnp.dot(normed_scr[...], w_ref[...],
                  preferred_element_type=jnp.float32)
    out_ref[...] = (acc + b_ref[...]).astype(out_ref.dtype)


def _kernel_stream_nores(h_ref, lnw_ref, lnb_ref, w_ref, b_ref,
                         out_ref, normed_scr):
    @pl.when(pl.program_id(1) == 0)
    def _():
        normed_scr[...] = _layernorm_f32(
            h_ref[...].astype(jnp.float32), lnw_ref[...], lnb_ref[...]
        ).astype(normed_scr.dtype)

    acc = jnp.dot(normed_scr[...], w_ref[...],
                  preferred_element_type=jnp.float32)
    out_ref[...] = (acc + b_ref[...]).astype(out_ref.dtype)


# ---------------------------------------------------------------------------
# Wrapper: fused Block forward (Add -> LN -> Mixer), single pallas_call
# ---------------------------------------------------------------------------
def block_forward(hidden, residual, ln_w, ln_b, mix_w, mix_b, *,
                  residual_in_fp32=False, rows_tile=512, n_tile=None,
                  matmul_dtype=None, weight_resident_bytes=None):
    """hidden, residual: (B, L, D).  mix_w: (D, D) stored so y = x @ mix_w."""
    B, L, D = hidden.shape
    rows = B * L
    out_dtype = hidden.dtype
    has_res = residual is not None

    # MXU operand dtype: fp32 inputs take the native bf16 path (f32 accumulate).
    if matmul_dtype is not None:
        compute_dtype = jnp.dtype(matmul_dtype)
    elif hidden.dtype == jnp.float32:
        compute_dtype = jnp.dtype(jnp.bfloat16)
    else:
        compute_dtype = jnp.dtype(hidden.dtype)

    Dp = _round_up(D, 128)  # lane-dense output width (unmasked stores)

    physical = _physical_vmem_bytes()
    vmem_cap = (physical * 3) // 4           # never the full physical VMEM (v7x!)
    resident_budget = (physical // 4 if weight_resident_bytes is None
                       else int(weight_resident_bytes))

    weight_bytes = D * Dp * _itemsize(compute_dtype)
    resident = (n_tile is None) and (weight_bytes <= resident_budget)

    if resident:
        tn = Dp
    elif n_tile is not None:
        tn = int(n_tile)
        if tn % 128 != 0 or Dp % tn != 0:
            raise ValueError(
                f"n_tile={tn} must be a multiple of 128 that divides padded D={Dp}")
    else:
        tn = 512 if (Dp % 512 == 0 and Dp >= 2048) else (256 if Dp % 256 == 0 else 128)
    nj = Dp // tn

    if residual_in_fp32:
        res_dtype = jnp.dtype(jnp.float32)
    elif has_res:
        res_dtype = jnp.result_type(hidden.dtype, residual.dtype)
    else:
        res_dtype = jnp.dtype(hidden.dtype)

    h_item = _itemsize(hidden.dtype)
    r_item = _itemsize(residual.dtype) if has_res else 0
    res_item = _itemsize(res_dtype)
    out_item = _itemsize(out_dtype)
    c_item = _itemsize(compute_dtype)

    def est(rt):
        total = 2 * rt * D * h_item                 # hidden (double buffered)
        if has_res:
            total += 2 * rt * D * r_item            # residual input
            total += 2 * rt * D * res_item          # residual output
        total += 2 * rt * tn * out_item             # mixer output tile
        if resident:
            total += 2 * D * Dp * c_item            # resident weight (conservative)
        else:
            total += 2 * D * tn * c_item            # streamed weight tile
            total += rt * D * c_item                # normed scratch
        total += 2 * rt * D * 4                     # fp32 LN temporaries headroom
        return total

    # Pad rows only to a multiple of 8 (sublane); ragged row tiles are handled
    # by pl.cdiv + masked stores instead of full-array pad / un-pad copies.
    rows_p = _round_up(rows, 8)
    rt = max(8, min(_round_up(rows_tile, 8), rows_p))
    budget = (vmem_cap * 7) // 10
    while rt > 64 and est(rt) > budget:
        rt = max(64, _round_up(rt // 2, 8))
    gi = pl.cdiv(rows_p, rt)

    h2 = hidden.reshape(rows, D)
    if rows_p != rows:
        h2 = jnp.pad(h2, ((0, rows_p - rows), (0, 0)))
    if has_res:
        r2 = residual.reshape(rows, D)
        if rows_p != rows:
            r2 = jnp.pad(r2, ((0, rows_p - rows), (0, 0)))

    lnw2 = ln_w.reshape(1, D).astype(jnp.float32)
    lnb2 = ln_b.reshape(1, D).astype(jnp.float32)
    w2 = mix_w.astype(compute_dtype)
    b2 = mix_b.reshape(1, D).astype(jnp.float32)
    if Dp != D:
        w2 = jnp.pad(w2, ((0, 0), (0, Dp - D)))
        b2 = jnp.pad(b2, ((0, 0), (0, Dp - D)))

    out_struct = jax.ShapeDtypeStruct((rows_p, Dp), out_dtype)
    res_struct = jax.ShapeDtypeStruct((rows_p, D), res_dtype)

    if resident:
        row_spec = pl.BlockSpec((rt, D), lambda i: (i, 0))
        vec_spec = pl.BlockSpec((1, D), lambda i: (0, 0))
        w_spec = pl.BlockSpec((D, Dp), lambda i: (0, 0))    # DMA'd exactly once
        b_spec = pl.BlockSpec((1, Dp), lambda i: (0, 0))
        out_spec = pl.BlockSpec((rt, Dp), lambda i: (i, 0))
        res_spec = pl.BlockSpec((rt, D), lambda i: (i, 0))
        grid = (gi,)
        dims = ("parallel",)
        scratch = []
        if has_res:
            kernel = _kernel_resident_res
            in_specs = [row_spec, row_spec, vec_spec, vec_spec, w_spec, b_spec]
            args = (h2, r2, lnw2, lnb2, w2, b2)
            out_specs = [out_spec, res_spec]
            out_shapes = (out_struct, res_struct)
        else:
            kernel = _kernel_resident_nores
            in_specs = [row_spec, vec_spec, vec_spec, w_spec, b_spec]
            args = (h2, lnw2, lnb2, w2, b2)
            out_specs = [out_spec]
            out_shapes = (out_struct,)
    else:
        row_spec = pl.BlockSpec((rt, D), lambda i, j: (i, 0))
        vec_spec = pl.BlockSpec((1, D), lambda i, j: (0, 0))
        w_spec = pl.BlockSpec((D, tn), lambda i, j: (0, j))
        b_spec = pl.BlockSpec((1, tn), lambda i, j: (0, j))
        out_spec = pl.BlockSpec((rt, tn), lambda i, j: (i, j))
        res_spec = pl.BlockSpec((rt, D), lambda i, j: (i, 0))
        grid = (gi, nj)
        dims = ("parallel", "arbitrary")
        scratch = [pltpu.VMEM((rt, D), compute_dtype)]
        if has_res:
            kernel = _kernel_stream_res
            in_specs = [row_spec, row_spec, vec_spec, vec_spec, w_spec, b_spec]
            args = (h2, r2, lnw2, lnb2, w2, b2)
            out_specs = [out_spec, res_spec]
            out_shapes = (out_struct, res_struct)
        else:
            kernel = _kernel_stream_nores
            in_specs = [row_spec, vec_spec, vec_spec, w_spec, b_spec]
            args = (h2, lnw2, lnb2, w2, b2)
            out_specs = [out_spec]
            out_shapes = (out_struct,)

    results = pl.pallas_call(
        kernel,
        out_shape=out_shapes,
        grid_spec=pltpu.PrefetchScalarGridSpec(
            num_scalar_prefetch=0,
            grid=grid,
            in_specs=in_specs,
            out_specs=out_specs,
            scratch_shapes=scratch,
        ),
        compiler_params=pltpu.CompilerParams(
            dimension_semantics=dims,
            vmem_limit_bytes=vmem_cap,
        ),
    )(*args)

    out = results[0]
    if rows_p != rows or Dp != D:
        out = out[:rows, :D]
    out = out.reshape(B, L, D)

    if has_res:
        res = results[1]
        if rows_p != rows:
            res = res[:rows]
        res = res.reshape(B, L, D)
    else:
        # residual = hidden_states (optionally cast to fp32): no kernel store.
        res = hidden if res_dtype == hidden.dtype else hidden.astype(res_dtype)

    return out, res


# ---------------------------------------------------------------------------
# Block wrapper (mirrors PyTorch `Block.forward`, prenorm semantics)
# ---------------------------------------------------------------------------
class BlockPallas:
    def __init__(self, dim, key, residual_in_fp32=False):
        self.dim = dim
        self.residual_in_fp32 = residual_in_fp32
        # LayerNorm params: torch default init (weight=1, bias=0).
        self.ln_weight = jnp.ones((dim,), jnp.float32)
        self.ln_bias = jnp.zeros((dim,), jnp.float32)
        # TODO(synk): stand-in dense Linear mixer; real mixer_cls is Mamba.
        k1, _ = jax.random.split(key)
        self.mixer_w = (jax.random.normal(k1, (dim, dim), jnp.float32)
                        / jnp.sqrt(dim))
        self.mixer_b = jnp.zeros((dim,), jnp.float32)

    def __call__(self, hidden_states, residual=None, **kw):
        return block_forward(
            hidden_states, residual,
            self.ln_weight, self.ln_bias,
            self.mixer_w, self.mixer_b,
            residual_in_fp32=self.residual_in_fp32, **kw)


# ---------------------------------------------------------------------------
# Reference + tests
# ---------------------------------------------------------------------------
def _ref_block(h, r, blk, compute_dtype=jnp.bfloat16):
    res = h if r is None else h + r
    res32 = res.astype(jnp.float32)
    mean = res32.mean(-1, keepdims=True)
    var = ((res32 - mean) ** 2).mean(-1, keepdims=True)
    normed = ((res32 - mean) * jax.lax.rsqrt(var + LN_EPS)
              * blk.ln_weight + blk.ln_bias)
    # Mirror the kernel's MXU operand dtype (bf16 for fp32 inputs).
    out = jnp.einsum(
        "bld,de->ble",
        normed.astype(compute_dtype).astype(jnp.float32),
        blk.mixer_w.astype(compute_dtype).astype(jnp.float32),
        precision=jax.lax.Precision.HIGHEST) + blk.mixer_b
    res_out = res32 if blk.residual_in_fp32 else res
    return out.astype(h.dtype), res_out


if __name__ == "__main__":
    root = jax.random.PRNGKey(0)

    def check(B, L, D, with_residual, **kw):
        kx, kr, kp = jax.random.split(
            jax.random.fold_in(root, B * 100003 + L * 131 + D), 3)
        hidden = jax.random.normal(kx, (B, L, D), jnp.float32)
        residual = (jax.random.normal(kr, (B, L, D), jnp.float32)
                    if with_residual else None)
        blk = BlockPallas(D, kp, residual_in_fp32=True)

        h, r = blk(hidden, residual, **kw)
        jax.block_until_ready((h, r))

        h_ref, r_ref = _ref_block(hidden, residual, blk)
        assert h.shape == (B, L, D) and r.shape == (B, L, D)
        assert r.dtype == jnp.float32
        assert jnp.allclose(r_ref, r, atol=1e-5, rtol=1e-5), "residual mismatch"
        assert jnp.allclose(h_ref, h, atol=1e-2, rtol=1e-2), "mixer output mismatch"

    # Resident-weight path (first block without residual, then with residual).
    check(2, 8, 128, with_residual=False)
    check(2, 8, 128, with_residual=True)
    # Forced weight-streaming path (2-D grid, LN scratch reused across j tiles).
    check(2, 8, 128, with_residual=True, weight_resident_bytes=0, n_tile=128)
    # Multiple row tiles with a ragged trailing row block (rows=600, rt=512).
    check(2, 300, 256, with_residual=True)
    check(2, 300, 256, with_residual=True, weight_resident_bytes=0, n_tile=128)
    # D not a multiple of 128: output columns padded to 128 inside the kernel.
    check(2, 8, 96, with_residual=True)

    print("KERNEL_OK")
</pallas_src>

<mosaic_0001>
module attributes {stable_mosaic.version = 11 : i64} {
  func.func @_kernel_resident_nores(%arg0: i32, %arg1: memref<16x128xf32, #tpu.memory_space<vmem>>, %arg2: memref<1x128xf32, #tpu.memory_space<vmem>>, %arg3: memref<1x128xf32, #tpu.memory_space<vmem>>, %arg4: memref<128x128xbf16, #tpu.memory_space<vmem>>, %arg5: memref<1x128xf32, #tpu.memory_space<vmem>>, %arg6: memref<16x128xf32, #tpu.memory_space<vmem>>) attributes {dimension_semantics = [#tpu.dimension_semantics<parallel>], iteration_bounds = array<i64: 1>, scalar_prefetch = 0 : i64, scratch_operands = 0 : i64, tpu.core_type = #tpu.core_type<tc>, window_params = [{transform_indices = @transform_0, window_bounds = array<i64: 16, 128>}, {pipeline_mode = #tpu.pipeline_mode<synchronous>, transform_indices = @transform_1, window_bounds = array<i64: 1, 128>}, {pipeline_mode = #tpu.pipeline_mode<synchronous>, transform_indices = @transform_2, window_bounds = array<i64: 1, 128>}, {pipeline_mode = #tpu.pipeline_mode<synchronous>, transform_indices = @transform_3, window_bounds = array<i64: 128, 128>}, {pipeline_mode = #tpu.pipeline_mode<synchronous>, transform_indices = @transform_4, window_bounds = array<i64: 1, 128>}, {transform_indices = @transform_5, window_bounds = array<i64: 16, 128>}]} {
    %c0 = arith.constant 0 : index
    %c0_0 = arith.constant 0 : index
    %0 = vector.load %arg1[%c0, %c0_0] : memref<16x128xf32, #tpu.memory_space<vmem>>, vector<16x128xf32>
    %c0_1 = arith.constant 0 : index
    %c0_2 = arith.constant 0 : index
    %1 = vector.load %arg2[%c0_1, %c0_2] : memref<1x128xf32, #tpu.memory_space<vmem>>, vector<1x128xf32>
    %c0_3 = arith.constant 0 : index
    %c0_4 = arith.constant 0 : index
    %2 = vector.load %arg3[%c0_3, %c0_4] : memref<1x128xf32, #tpu.memory_space<vmem>>, vector<1x128xf32>
    %cst = arith.constant dense<0.000000e+00> : vector<16xf32>
    %3 = vector.multi_reduction <add>, %0, %cst [1] : vector<16x128xf32> to vector<16xf32>
    %4 = vector.shape_cast %3 : vector<16xf32> to vector<16x1xf32>
    %cst_5 = arith.constant 1.280000e+02 : f32
    %5 = vector.broadcast %cst_5 : f32 to vector<16x1xf32>
    %6 = arith.divf %4, %5 : vector<16x1xf32>
    %7 = vector.broadcast %6 : vector<16x1xf32> to vector<16x128xf32>
    %8 = arith.subf %0, %7 : vector<16x128xf32>
    %9 = arith.mulf %8, %8 : vector<16x128xf32>
    %cst_6 = arith.constant dense<0.000000e+00> : vector<16xf32>
    %10 = vector.multi_reduction <add>, %9, %cst_6 [1] : vector<16x128xf32> to vector<16xf32>
    %11 = vector.shape_cast %10 : vector<16xf32> to vector<16x1xf32>
    %cst_7 = arith.constant 1.280000e+02 : f32
    %12 = vector.broadcast %cst_7 : f32 to vector<16x1xf32>
    %13 = arith.divf %11, %12 : vector<16x1xf32>
    %cst_8 = arith.constant 9.99999974E-6 : f32
    %14 = vector.broadcast %cst_8 : f32 to vector<16x1xf32>
    %15 = arith.addf %13, %14 : vector<16x1xf32>
    %16 = math.rsqrt %15 : vector<16x1xf32>
    %17 = vector.broadcast %16 : vector<16x1xf32> to vector<16x128xf32>
    %18 = arith.mulf %8, %17 : vector<16x128xf32>
    %19 = vector.broadcast %1 : vector<1x128xf32> to vector<16x128xf32>
    %20 = arith.mulf %18, %19 : vector<16x128xf32>
    %21 = vector.broadcast %2 : vector<1x128xf32> to vector<16x128xf32>
    %22 = arith.addf %20, %21 : vector<16x128xf32>
    %23 = arith.truncf %22 : vector<16x128xf32> to vector<16x128xbf16>
    %c0_9 = arith.constant 0 : index
    %c0_10 = arith.constant 0 : index
    %24 = vector.load %arg4[%c0_9, %c0_10] : memref<128x128xbf16, #tpu.memory_space<vmem>>, vector<128x128xbf16>
    %cst_11 = arith.constant dense<0.000000e+00> : vector<16x128xf32>
    %25 = tpu.matmul %23, %24, %cst_11 {dimension_numbers = #tpu.dot_dimension_numbers<[1], [0], [0], [1], [0, 0, 1, 1], [], []>} : vector<16x128xbf16>, vector<128x128xbf16>, vector<16x128xf32> -> vector<16x128xf32>
    %c0_12 = arith.constant 0 : index
    %c0_13 = arith.constant 0 : index
    %26 = vector.load %arg5[%c0_12, %c0_13] : memref<1x128xf32, #tpu.memory_space<vmem>>, vector<1x128xf32>
    %27 = vector.broadcast %26 : vector<1x128xf32> to vector<16x128xf32>
    %28 = arith.addf %25, %27 : vector<16x128xf32>
    %c0_14 = arith.constant 0 : index
    %c0_15 = arith.constant 0 : index
    %29 = vector.load %arg6[%c0_14, %c0_15] : memref<16x128xf32, #tpu.memory_space<vmem>>, vector<16x128xf32>
    tpu.vector_store %arg6[%c0_14, %c0_15], %28 {strides = array<i32>} : memref<16x128xf32, #tpu.memory_space<vmem>>, vector<16x128xf32>,
    return
  }
  func.func @transform_0(%arg0: i32) -> (i32, i32) {
    %c0_i32 = arith.constant 0 : i32
    %c0_i32_0 = arith.constant 0 : i32
    return %arg0, %c0_i32 : i32, i32
  }
  func.func @transform_1(%arg0: i32) -> (i32, i32) {
    %c0_i32 = arith.constant 0 : i32
    %c0_i32_0 = arith.constant 0 : i32
    %c0_i32_1 = arith.constant 0 : i32
    return %c0_i32, %c0_i32_0 : i32, i32
  }
  func.func @transform_2(%arg0: i32) -> (i32, i32) {
    %c0_i32 = arith.constant 0 : i32
    %c0_i32_0 = arith.constant 0 : i32
    %c0_i32_1 = arith.constant 0 : i32
    return %c0_i32, %c0_i32_0 : i32, i32
  }
  func.func @transform_3(%arg0: i32) -> (i32, i32) {
    %c0_i32 = arith.constant 0 : i32
    %c0_i32_0 = arith.constant 0 : i32
    %c0_i32_1 = arith.constant 0 : i32
    return %c0_i32, %c0_i32_0 : i32, i32
  }
  func.func @transform_4(%arg0: i32) -> (i32, i32) {
    %c0_i32 = arith.constant 0 : i32
    %c0_i32_0 = arith.constant 0 : i32
    %c0_i32_1 = arith.constant 0 : i32
    return %c0_i32, %c0_i32_0 : i32, i32
  }
  func.func @transform_5(%arg0: i32) -> (i32, i32) {
    %c0_i32 = arith.constant 0 : i32
    %c0_i32_0 = arith.constant 0 : i32
    return %arg0, %c0_i32 : i32, i32
  }
}

</mosaic_0001>

<llo_original>
// kernel: tpu_custom_call.1
$region0: #{tpu_custom_call.1}
  #allocation0 [shape = 'u32[]', space=smem, size = 0x4, offset = 0x4, fixed_abs, tag = 'smem constant byte address 0x4 - core index']
  #allocation1 [shape = 'u32[144,128]{1,0:T(1,128)}', space=vmem, size = 0x12000, scoped, tag = 'internal scratch']
  %s0 = inlined_call_operand.hbm [shape: f32[16,128], index: 0, kind: input, shape index: {}]
  %s1 = inlined_call_operand.vmem [shape: f32[1,128], index: 1, kind: input, shape index: {}]
  %s2 = inlined_call_operand.vmem [shape: f32[1,128], index: 2, kind: input, shape index: {}]
  %s3 = inlined_call_operand.hbm [shape: bf16[128,128], index: 3, kind: input, shape index: {}]
  %s4 = inlined_call_operand.vmem [shape: f32[1,128], index: 4, kind: input, shape index: {}]
  %s5 = inlined_call_operand.hbm [shape: f32[16,128], index: 5, kind: output, shape index: {}]
  %s6 = sld [smem:[#allocation0]]
  $region38: #{tpu_custom_call.1} parent=0
    _
  %s8 = ssub.s32 1, %s6
  %s9 = scalar_select 0, %s8, %s6
  $region1: #{tpu_custom_call.1} parent=0
    #allocation2 [shape = 'u8[8192]{0}', space=vmem, size = 0x2000, scoped, tag = 'input window, operand 0, single buffered']
    #allocation3 [shape = 's32[1]{0}', space=sflag, size = 0x4, scoped, tag = 'scoped memory for tpu_custom_call.1']
    #allocation4 [shape = 's32[1]{0}', space=sflag, size = 0x4, scoped, tag = 'scoped memory for tpu_custom_call.1']
    #allocation5 [shape = 'u8[32768]{0}', space=vmem, size = 0x8000, scoped, tag = 'input window, operand 3, single buffered']
    #allocation6 [shape = 's32[1]{0}', space=sflag, size = 0x4, scoped, tag = 'scoped memory for tpu_custom_call.1']
    #allocation7 [shape = 'u8[8192]{0}', space=vmem, size = 0x2000, scoped, tag = 'output window, operand 0, single buffered']
    %10 = vsyncpa [#allocation3], 0
    %11 = vsyncpa [#allocation6], 0
    %12 = vsyncpa [#allocation4], 0
    // Predicated region
    $region2: #{tpu_custom_call.1} parent=1 // pred_check
      _
    $region3: #{tpu_custom_call.1} parent=1 // pred_check_branch
      %14 = sbr.rel (0) target = $region5
    $region4: #{tpu_custom_call.1} parent=1 // pred_region
      %s16 = ssub.s32 256, 256
      %17 = vsyncadd [#allocation3], %s16
      %s18 = sshll.u32 [#allocation2], 4
      %s19 = int_to_ptr.vmem [resolvable:$true] %s18
      %24 = dma.hbm_to_vmem [thread:$0]  %s0, 256, %s19, [#allocation3], 128, 128, 8
    $region5: #{tpu_custom_call.1} parent=1 // pred_fallthru
      _
    // Predicated region
    $region6: #{tpu_custom_call.1} parent=1 // pred_check
      _
    $region7: #{tpu_custom_call.1} parent=1 // pred_check_branch
      %26 = sbr.rel (0) target = $region9
    $region8: #{tpu_custom_call.1} parent=1 // pred_region
      _
    $region9: #{tpu_custom_call.1} parent=1 // pred_fallthru
      _
    // Predicated region
    $region10: #{tpu_custom_call.1} parent=1 // pred_check
      _
    $region11: #{tpu_custom_call.1} parent=1 // pred_check_branch
      %28 = sbr.rel (0) target = $region13
    $region12: #{tpu_custom_call.1} parent=1 // pred_region
      _
    $region13: #{tpu_custom_call.1} parent=1 // pred_fallthru
      _
    // Predicated region
    $region14: #{tpu_custom_call.1} parent=1 // pred_check
      _
    $region15: #{tpu_custom_call.1} parent=1 // pred_check_branch
      %30 = sbr.rel (0) target = $region17
    $region16: #{tpu_custom_call.1} parent=1 // pred_region
      %s32 = ssub.s32 1024, 1024
      %33 = vsyncadd [#allocation6], %s32
      %s34 = sshll.u32 [#allocation5], 4
      %s35 = int_to_ptr.vmem [resolvable:$true] %s34
      %40 = dma.hbm_to_vmem [thread:$0]  %s3, 1024, %s35, [#allocation6], 64, 64, 4
    $region17: #{tpu_custom_call.1} parent=1 // pred_fallthru
      _
    // Predicated region
    $region18: #{tpu_custom_call.1} parent=1 // pred_check
      _
    $region19: #{tpu_custom_call.1} parent=1 // pred_check_branch
      %42 = sbr.rel (0) target = $region21
    $region20: #{tpu_custom_call.1} parent=1 // pred_region
      _
    $region21: #{tpu_custom_call.1} parent=1 // pred_fallthru
      _
    // Predicated region
    $region22: #{tpu_custom_call.1} parent=1 // pred_check
      _
    $region23: #{tpu_custom_call.1} parent=1 // pred_check_branch
      %44 = sbr.rel (0) target = $region25
    $region24: #{tpu_custom_call.1} parent=1 // pred_region
      %45 = dma.done [#allocation3], 256
    $region25: #{tpu_custom_call.1} parent=1 // pred_fallthru
      _
    // Predicated region
    $region26: #{tpu_custom_call.1} parent=1 // pred_check
      _
    $region27: #{tpu_custom_call.1} parent=1 // pred_check_branch
      %47 = sbr.rel (0) target = $region29
    $region28: #{tpu_custom_call.1} parent=1 // pred_region
      %48 = dma.done [#allocation6], 1024
    $region29: #{tpu_custom_call.1} parent=1 // pred_fallthru
      _
    %v50 = vld [vmem:[#allocation2] sm:$0xff]
    %v51 = vld [vmem:[#allocation2 + $0x8] sm:$0xff]
    %v52 = vld [vmem:[%s1] sm:$0x1]
    %v53 = vld [vmem:[%s2] sm:$0x1]
    %54 = vadd.xlane.f32.xlu0 %v50
    %v55 = vpop.xlane.xlu0 %54
    %56 = vadd.xlane.f32.xlu0 %v51
    %v57 = vpop.xlane.xlu0 %56
    %v58 = vrcp.pop 128.0
    %v59 = vmul.f32 %v55, %v58
    %v60 = vmul.f32 %v57, %v58
    %v61 = vsub.f32 %v50, %v59
    %v62 = vsub.f32 %v51, %v60
    %v63 = vmul.f32 %v61, %v61
    %v64 = vmul.f32 %v62, %v62
    %65 = vadd.xlane.f32.xlu0 %v63
    %v66 = vpop.xlane.xlu0 %65
    %67 = vadd.xlane.f32.xlu0 %v64
    %v68 = vpop.xlane.xlu0 %67
    %v69 = vmul.f32 %v66, %v58
    %v70 = vmul.f32 %v68, %v58
    %v71 = vadd.f32 %v69, 1e-05
    %v72 = vadd.f32 %v70, 1e-05
    %v73 = vrsqrt.pop %v71
    %v74 = vrsqrt.pop %v72
    %v75 = vmul.f32 %v61, %v73
    %v76 = vmul.f32 %v62, %v74
    %v78 = vlaneseq
    %v79 = vshrl.u32 %v78, 7
    %v80 = vsub.s32 0, %v79
    %v81 = vrot.slane %v52, %v80
    %v83 = vmul.f32 %v75, %v81
    %v84 = vmul.f32 %v76, %v81
    %v86 = vlaneseq
    %v87 = vshrl.u32 %v86, 7
    %v88 = vsub.s32 0, %v87
    %v89 = vrot.slane %v53, %v88
    %v91 = vadd.f32 %v83, %v89
    %v92 = vadd.f32 %v84, %v89
    %v93 = vpack.c.bf16 %v92, %v91
    %v94 = vld [vmem:[#allocation5] sm:$0xf]
    %v95 = vld [vmem:[#allocation5 + $0x4] sm:$0xf]
    %v96 = vld [vmem:[#allocation5 + $0x8] sm:$0xf]
    %v97 = vld [vmem:[#allocation5 + $0xc] sm:$0xf]
    %v98 = vld [vmem:[#allocation5 + $0x10] sm:$0xf]
    %v99 = vld [vmem:[#allocation5 + $0x14] sm:$0xf]
    %v100 = vld [vmem:[#allocation5 + $0x18] sm:$0xf]
    %v101 = vld [vmem:[#allocation5 + $0x1c] sm:$0xf]
    %v102 = vld [vmem:[#allocation5 + $0x20] sm:$0xf]
    %v103 = vld [vmem:[#allocation5 + $0x24] sm:$0xf]
    %v104 = vld [vmem:[#allocation5 + $0x28] sm:$0xf]
    %v105 = vld [vmem:[#allocation5 + $0x2c] sm:$0xf]
    %v106 = vld [vmem:[#allocation5 + $0x30] sm:$0xf]
    %v107 = vld [vmem:[#allocation5 + $0x34] sm:$0xf]
    %v108 = vld [vmem:[#allocation5 + $0x38] sm:$0xf]
    %v109 = vld [vmem:[#allocation5 + $0x3c] sm:$0xf]
    %v110 = vld [vmem:[%s4] sm:$0x1]
    %v112 = vlaneseq
    %v113 = vshrl.u32 %v112, 7
    %v114 = vsub.s32 0, %v113
    %v115 = vrot.slane %v110, %v114
    %v133 = vunpack.c.l.b16 %v94
    %v134 = vunpack.c.l.b16 %v95
    %v135 = vunpack.c.l.b16 %v96
    %v136 = vunpack.c.l.b16 %v97
    %v137 = vunpack.c.l.b16 %v98
    %v138 = vunpack.c.l.b16 %v99
    %v139 = vunpack.c.l.b16 %v100
    %v140 = vunpack.c.l.b16 %v101
    %v141 = vunpack.c.l.b16 %v102
    %v142 = vunpack.c.l.b16 %v103
    %v143 = vunpack.c.l.b16 %v104
    %v144 = vunpack.c.l.b16 %v105
    %v145 = vunpack.c.l.b16 %v106
    %v146 = vunpack.c.l.b16 %v107
    %v147 = vunpack.c.l.b16 %v108
    %v148 = vunpack.c.l.b16 %v109
    %v149 = vpack.c.b16 %v134, %v133
    %v150 = vpack.c.b16 %v136, %v135
    %v151 = vpack.c.b16 %v138, %v137
    %v152 = vpack.c.b16 %v140, %v139
    %v153 = vpack.c.b16 %v142, %v141
    %v154 = vpack.c.b16 %v144, %v143
    %v155 = vpack.c.b16 %v146, %v145
    %v156 = vpack.c.b16 %v148, %v147
    %165 = vmatprep.subr.bf16.mxu0 0
    %166 = vmatpush1.bf16.msra.mxu0 %v156
    %167 = vmatprep.subr.bf16.mxu0 0
    %168 = vmatpush1.bf16.msra.mxu0 %v155
    %169 = vmatprep.subr.bf16.mxu0 0
    %170 = vmatpush1.bf16.msra.mxu0 %v154
    %171 = vmatprep.subr.bf16.mxu0 0
    %172 = vmatpush1.bf16.msra.mxu0 %v153
    %173 = vmatprep.subr.bf16.mxu0 0
    %174 = vmatpush1.bf16.msra.mxu0 %v152
    %175 = vmatprep.subr.bf16.mxu0 0
    %176 = vmatpush1.bf16.msra.mxu0 %v151
    %177 = vmatprep.subr.bf16.mxu0 0
    %178 = vmatpush1.bf16.msra.mxu0 %v150
    %179 = vmatprep.subr.bf16.mxu0 0
    %180 = vmatpush1.bf16.msra.mxu0 %v149
    %181 = vmatprep.subr.bf16.mxu0 0
    %182 = vmatpush2.bf16.msra.mxu0 0
    %183 = vmatprep.subr.bf16.mxu0 0
    %184 = vmatpush2.bf16.msra.mxu0 0
    %185 = vmatprep.subr.bf16.mxu0 0
    %186 = vmatpush2.bf16.msra.mxu0 0
    %187 = vmatprep.subr.bf16.mxu0 0
    %188 = vmatpush2.bf16.msra.mxu0 0
    %189 = vmatprep.subr.bf16.mxu0 0
    %190 = vmatpush2.bf16.msra.mxu0 0
    %191 = vmatprep.subr.bf16.mxu0 0
    %192 = vmatpush2.bf16.msra.mxu0 0
    %193 = vmatprep.subr.bf16.mxu0 0
    %194 = vmatpush2.bf16.msra.mxu0 0
    %195 = vmatprep.subr.bf16.mxu0 0
    %196 = vmatpush2.bf16.msra.mxu0 0
    %197 = vmatprep.mubr.bf16.mxu0 0
    %198 = vmatmul.mubr.bf16.gmra.mxu0 %v93
    %v199 = vpop.f32.mrf.mxu0
    %v200 = vadd.f32 %v115, %v199
    %v201 = vpop.f32.mrf.mxu0
    %v202 = vpop.f32.mrf.mxu0
    %v203 = vadd.f32 %v115, %v202
    %v204 = vpop.f32.mrf.mxu0
    %205 = vdwg.mxu0
    %206 = vst [vmem:[#allocation7] sm:$0xff] %v200
    %207 = vst [vmem:[#allocation7 + $0x8] sm:$0xff] %v203
    // Predicated region
    $region30: #{tpu_custom_call.1} parent=1 // pred_check
      _
    $region31: #{tpu_custom_call.1} parent=1 // pred_check_branch
      %209 = sbr.rel (0) target = $region33
    $region32: #{tpu_custom_call.1} parent=1 // pred_region
      %s211 = ssub.s32 256, 256
      %212 = vsyncadd [#allocation4], %s211
      %s213 = sshll.u32 [#allocation7], 4
      %s214 = int_to_ptr.vmem [resolvable:$true] %s213
      %219 = dma.vmem_to_hbm [thread:$0]  %s214, 256, %s5, [#allocation4], 128, 128, 8
    $region33: #{tpu_custom_call.1} parent=1 // pred_fallthru
      _
    // Predicated region
    $region34: #{tpu_custom_call.1} parent=1 // pred_check
      _
    $region35: #{tpu_custom_call.1} parent=1 // pred_check_branch
      %221 = sbr.rel (0) target = $region37
    $region36: #{tpu_custom_call.1} parent=1 // pred_region
      %222 = dma.done [#allocation4], 256
    $region37: #{tpu_custom_call.1} parent=1 // pred_fallthru
      _
    %223 = vsyncpa [#allocation3], 1
    %224 = vsyncpa [#allocation6], 1
    %225 = vsyncpa [#allocation4], 1

</llo_original>
